<compile_context>
chip_gen: v7x
topology: tpu7x:2x2x1
jax: 0.10.0
libtpu: 0.0.40
codegen_flags: <defaults>
</compile_context>

<pallas_src>
import jax
import jax.numpy as jnp
from jax.experimental import pallas as pl
from jax.experimental.pallas import tpu as pltpu


def _dwconv_block_kernel(x_ref, wpw_ref, bpw_ref, wdw_ref, bdw_ref, o_ref):
    """One (batch, channel-tile) grid point.

    x_ref:   (1, C, L)     full channels + full length for this batch element
    wpw_ref: (C_TILE, C)   pointwise weight with BN2 scale folded in
    bpw_ref: (C_TILE, 1)   pointwise bias + BN2 shift folded in
    wdw_ref: (C_TILE, K)   depthwise weight with BN1 scale folded in
    bdw_ref: (C_TILE, 1)   depthwise bias + BN1 shift folded in
    o_ref:   (1, C_TILE, L)
    """
    x = x_ref[0]                                               # (C, L)

    # Pointwise Conv1d (k=1) == channel-mixing matmul on the MXU, then BN2 affine.
    y = jnp.dot(wpw_ref[...], x, preferred_element_type=jnp.float32)
    y = y + bpw_ref[...]                                       # (C_TILE, L)

    ct, L = y.shape
    w_dw = wdw_ref[...]                                        # (C_TILE, K)
    K = w_dw.shape[-1]
    pad = K // 2

    # Depthwise Conv1d with zero padding: K static lane-shifted taps over full L.
    if pad > 0:
        zeros = jnp.zeros((ct, pad), dtype=y.dtype)
        y_pad = jnp.concatenate([zeros, y, zeros], axis=-1)    # (C_TILE, L + 2*pad)
    else:
        y_pad = y

    acc = jnp.zeros((ct, L), dtype=jnp.float32)
    for t in range(K):                                         # K is small; static unroll
        acc = acc + w_dw[:, t:t + 1] * y_pad[:, t:t + L]
    acc = acc + bdw_ref[...]                                   # depthwise bias + BN1 shift

    o_ref[0] = acc.astype(o_ref.dtype)


def depthwise_conv1d_block(x, pw_weight, pw_bias, dw_weight, dw_bias,
                           bn2_gamma, bn2_beta, bn2_mean, bn2_var,
                           bn1_gamma, bn1_beta, bn1_mean, bn1_var,
                           *, eps=1e-5, c_tile=None):
    """x: (B, C, L). pw_weight: (C, C, 1) torch Conv1d layout. dw_weight: (C, 1, K)."""
    B, C, L = x.shape
    K = dw_weight.shape[-1]
    assert K % 2 == 1, "padding=K//2 only preserves length for odd K"

    f32 = jnp.float32
    # --- fold inference-mode BatchNorm into the adjacent conv (pure wrapper glue) ---
    # bn(y) = s*y + (beta - s*mean),  s = gamma / sqrt(var + eps)
    s2 = bn2_gamma / jnp.sqrt(bn2_var + eps)                                   # (C,)
    w_pw = (pw_weight.reshape(C, C) * s2[:, None]).astype(f32)                 # (C, C)
    b_pw = (s2 * (pw_bias - bn2_mean) + bn2_beta).reshape(C, 1).astype(f32)    # (C, 1)

    s1 = bn1_gamma / jnp.sqrt(bn1_var + eps)
    w_dw = (dw_weight.reshape(C, K) * s1[:, None]).astype(f32)                 # (C, K)
    b_dw = (s1 * (dw_bias - bn1_mean) + bn1_beta).reshape(C, 1).astype(f32)    # (C, 1)

    # Channel tile: keep each (C_TILE, L) f32 output block around <= ~2 MiB so the
    # double-buffered pipeline fits comfortably on v5e/v6e/v7x scoped-VMEM budgets.
    if c_tile is None:
        max_rows = max(8, (2 * 1024 * 1024) // (4 * L))
        c_tile = C if C <= max_rows else (max_rows // 8) * 8
    if c_tile != C and c_tile % 8 != 0:
        c_tile = max(8, (c_tile // 8) * 8)
    num_ct = pl.cdiv(C, c_tile)

    cost = pl.CostEstimate(
        flops=2 * B * C * C * L + 2 * B * C * K * L,
        bytes_accessed=4 * (2 * B * C * L + C * C + C * K + 2 * C),
        transcendentals=0,
    )

    return pl.pallas_call(
        _dwconv_block_kernel,
        out_shape=jax.ShapeDtypeStruct((B, C, L), x.dtype),
        grid=(B, num_ct),
        in_specs=[
            pl.BlockSpec((1, C, L), lambda b, c: (b, 0, 0)),     # x: full C, full L
            pl.BlockSpec((c_tile, C), lambda b, c: (c, 0)),      # folded pointwise weight
            pl.BlockSpec((c_tile, 1), lambda b, c: (c, 0)),      # folded pointwise bias
            pl.BlockSpec((c_tile, K), lambda b, c: (c, 0)),      # folded depthwise weight
            pl.BlockSpec((c_tile, 1), lambda b, c: (c, 0)),      # folded depthwise bias
        ],
        out_specs=pl.BlockSpec((1, c_tile, L), lambda b, c: (b, c, 0)),
        compiler_params=pltpu.CompilerParams(
            dimension_semantics=("parallel", "parallel")),
        cost_estimate=cost,
    )(x, w_pw, b_pw, w_dw, b_dw)


def _reference(x, pw_weight, pw_bias, dw_weight, dw_bias,
               bn2_gamma, bn2_beta, bn2_mean, bn2_var,
               bn1_gamma, bn1_beta, bn1_mean, bn1_var, eps=1e-5):
    """Pure-JAX mirror of the PyTorch forward (eval-mode BatchNorm)."""
    B, C, L = x.shape
    K = dw_weight.shape[-1]
    pad = K // 2
    # pointwise Conv1d (k=1) + bias
    y = jnp.einsum('oc,bcl->bol', pw_weight.reshape(C, C), x) + pw_bias[None, :, None]
    # bn2
    y = (y - bn2_mean[None, :, None]) / jnp.sqrt(bn2_var + eps)[None, :, None]
    y = y * bn2_gamma[None, :, None] + bn2_beta[None, :, None]
    # depthwise Conv1d, padding = K//2, groups = C, + bias
    yp = jnp.pad(y, ((0, 0), (0, 0), (pad, pad)))
    out = jnp.zeros_like(y)
    for t in range(K):
        out = out + dw_weight[:, 0, t][None, :, None] * yp[:, :, t:t + L]
    out = out + dw_bias[None, :, None]
    # bn1
    out = (out - bn1_mean[None, :, None]) / jnp.sqrt(bn1_var + eps)[None, :, None]
    out = out * bn1_gamma[None, :, None] + bn1_beta[None, :, None]
    return out


if __name__ == "__main__":
    B, C, L, K = 2, 16, 128, 3

    key = jax.random.PRNGKey(0)
    keys = jax.random.split(key, 12)
    x = jax.random.normal(keys[0], (B, C, L), dtype=jnp.float32)

    # torch Conv1d layouts: pointwise (C_out, C_in, 1), depthwise (C_out, 1, K)
    pw_weight = jax.random.normal(keys[1], (C, C, 1), dtype=jnp.float32) * 0.2
    pw_bias = jax.random.normal(keys[2], (C,), dtype=jnp.float32) * 0.1
    dw_weight = jax.random.normal(keys[3], (C, 1, K), dtype=jnp.float32) * 0.3
    dw_bias = jax.random.normal(keys[4], (C,), dtype=jnp.float32) * 0.1

    # BatchNorm (inference) parameters
    bn2_gamma = 1.0 + 0.1 * jax.random.normal(keys[5], (C,), dtype=jnp.float32)
    bn2_beta = 0.1 * jax.random.normal(keys[6], (C,), dtype=jnp.float32)
    bn2_mean = 0.2 * jax.random.normal(keys[7], (C,), dtype=jnp.float32)
    bn2_var = jax.random.uniform(keys[8], (C,), minval=0.5, maxval=1.5, dtype=jnp.float32)
    bn1_gamma = 1.0 + 0.1 * jax.random.normal(keys[9], (C,), dtype=jnp.float32)
    bn1_beta = 0.1 * jax.random.normal(keys[10], (C,), dtype=jnp.float32)
    bn1_mean = 0.2 * jax.random.normal(keys[11], (C,), dtype=jnp.float32)
    bn1_var = jnp.linspace(0.6, 1.4, C, dtype=jnp.float32)

    out = depthwise_conv1d_block(
        x, pw_weight, pw_bias, dw_weight, dw_bias,
        bn2_gamma, bn2_beta, bn2_mean, bn2_var,
        bn1_gamma, bn1_beta, bn1_mean, bn1_var)
    out = jax.block_until_ready(out)

    ref = _reference(
        x, pw_weight, pw_bias, dw_weight, dw_bias,
        bn2_gamma, bn2_beta, bn2_mean, bn2_var,
        bn1_gamma, bn1_beta, bn1_mean, bn1_var)

    assert out.shape == (B, C, L)
    assert jnp.allclose(out, ref, atol=1e-4, rtol=1e-4), (
        "mismatch vs reference: max abs err = %s" % float(jnp.max(jnp.abs(out - ref))))

    print("KERNEL_OK")
</pallas_src>

<mosaic_0001>
module attributes {stable_mosaic.version = 11 : i64} {
  func.func @_dwconv_block_kernel(%arg0: i32, %arg1: i32, %arg2: memref<1x16x128xf32, #tpu.memory_space<vmem>>, %arg3: memref<16x16xf32, #tpu.memory_space<vmem>>, %arg4: memref<16x1xf32, #tpu.memory_space<vmem>>, %arg5: memref<16x3xf32, #tpu.memory_space<vmem>>, %arg6: memref<16x1xf32, #tpu.memory_space<vmem>>, %arg7: memref<1x16x128xf32, #tpu.memory_space<vmem>>) attributes {dimension_semantics = [#tpu.dimension_semantics<parallel>, #tpu.dimension_semantics<parallel>], iteration_bounds = array<i64: 2, 1>, scalar_prefetch = 0 : i64, scratch_operands = 0 : i64, tpu.core_type = #tpu.core_type<tc>, window_params = [{transform_indices = @transform_0, window_bounds = array<i64: 1, 16, 128>}, {transform_indices = @transform_1, window_bounds = array<i64: 16, 16>}, {transform_indices = @transform_2, window_bounds = array<i64: 16, 1>}, {transform_indices = @transform_3, window_bounds = array<i64: 16, 3>}, {transform_indices = @transform_4, window_bounds = array<i64: 16, 1>}, {transform_indices = @transform_5, window_bounds = array<i64: 1, 16, 128>}]} {
    %c0 = arith.constant 0 : index
    %c0_0 = arith.constant 0 : index
    %c0_1 = arith.constant 0 : index
    %0 = vector.load %arg2[%c0, %c0_0, %c0_1] : memref<1x16x128xf32, #tpu.memory_space<vmem>>, vector<1x16x128xf32>
    %1 = vector.shape_cast %0 : vector<1x16x128xf32> to vector<16x128xf32>
    %c0_2 = arith.constant 0 : index
    %c0_3 = arith.constant 0 : index
    %2 = vector.load %arg3[%c0_2, %c0_3] : memref<16x16xf32, #tpu.memory_space<vmem>>, vector<16x16xf32>
    %cst = arith.constant dense<0.000000e+00> : vector<16x128xf32>
    %3 = tpu.matmul %2, %1, %cst {dimension_numbers = #tpu.dot_dimension_numbers<[1], [0], [0], [1], [0, 0, 1, 1], [], []>} : vector<16x16xf32>, vector<16x128xf32>, vector<16x128xf32> -> vector<16x128xf32>
    %c0_4 = arith.constant 0 : index
    %c0_5 = arith.constant 0 : index
    %4 = vector.load %arg4[%c0_4, %c0_5] : memref<16x1xf32, #tpu.memory_space<vmem>>, vector<16x1xf32>
    %5 = vector.broadcast %4 : vector<16x1xf32> to vector<16x128xf32>
    %6 = arith.addf %3, %5 : vector<16x128xf32>
    %c0_6 = arith.constant 0 : index
    %c0_7 = arith.constant 0 : index
    %7 = vector.load %arg5[%c0_6, %c0_7] : memref<16x3xf32, #tpu.memory_space<vmem>>, vector<16x3xf32>
    %cst_8 = arith.constant 0.000000e+00 : f32
    %8 = vector.broadcast %cst_8 : f32 to vector<16x1xf32>
    %9 = tpu.concatenate %8, %6, %8 in 1 : vector<16x1xf32>, vector<16x128xf32>, vector<16x1xf32> -> vector<16x130xf32>
    %cst_9 = arith.constant 0.000000e+00 : f32
    %10 = vector.broadcast %cst_9 : f32 to vector<16x128xf32>
    %11 = vector.extract_strided_slice %7 {offsets = [0, 0], sizes = [16, 1], strides = [1, 1]} : vector<16x3xf32> to vector<16x1xf32>
    %12 = vector.extract_strided_slice %9 {offsets = [0, 0], sizes = [16, 128], strides = [1, 1]} : vector<16x130xf32> to vector<16x128xf32>
    %13 = vector.broadcast %11 : vector<16x1xf32> to vector<16x128xf32>
    %14 = arith.mulf %13, %12 : vector<16x128xf32>
    %15 = arith.addf %10, %14 : vector<16x128xf32>
    %16 = vector.extract_strided_slice %7 {offsets = [0, 1], sizes = [16, 1], strides = [1, 1]} : vector<16x3xf32> to vector<16x1xf32>
    %17 = vector.extract_strided_slice %9 {offsets = [0, 1], sizes = [16, 128], strides = [1, 1]} : vector<16x130xf32> to vector<16x128xf32>
    %18 = vector.broadcast %16 : vector<16x1xf32> to vector<16x128xf32>
    %19 = arith.mulf %18, %17 : vector<16x128xf32>
    %20 = arith.addf %15, %19 : vector<16x128xf32>
    %21 = vector.extract_strided_slice %7 {offsets = [0, 2], sizes = [16, 1], strides = [1, 1]} : vector<16x3xf32> to vector<16x1xf32>
    %22 = vector.extract_strided_slice %9 {offsets = [0, 2], sizes = [16, 128], strides = [1, 1]} : vector<16x130xf32> to vector<16x128xf32>
    %23 = vector.broadcast %21 : vector<16x1xf32> to vector<16x128xf32>
    %24 = arith.mulf %23, %22 : vector<16x128xf32>
    %25 = arith.addf %20, %24 : vector<16x128xf32>
    %c0_10 = arith.constant 0 : index
    %c0_11 = arith.constant 0 : index
    %26 = vector.load %arg6[%c0_10, %c0_11] : memref<16x1xf32, #tpu.memory_space<vmem>>, vector<16x1xf32>
    %27 = vector.broadcast %26 : vector<16x1xf32> to vector<16x128xf32>
    %28 = arith.addf %25, %27 : vector<16x128xf32>
    %c0_12 = arith.constant 0 : index
    %c0_13 = arith.constant 0 : index
    %c0_14 = arith.constant 0 : index
    %29 = vector.load %arg7[%c0_12, %c0_13, %c0_14] : memref<1x16x128xf32, #tpu.memory_space<vmem>>, vector<1x16x128xf32>
    %30 = vector.shape_cast %29 : vector<1x16x128xf32> to vector<16x128xf32>
    %31 = vector.shape_cast %28 : vector<16x128xf32> to vector<1x16x128xf32>
    tpu.vector_store %arg7[%c0_12, %c0_13, %c0_14], %31 {strides = array<i32>} : memref<1x16x128xf32, #tpu.memory_space<vmem>>, vector<1x16x128xf32>,
    return
  }
  func.func @transform_0(%arg0: i32, %arg1: i32) -> (i32, i32, i32) {
    %c0_i32 = arith.constant 0 : i32
    %c0_i32_0 = arith.constant 0 : i32
    %c0_i32_1 = arith.constant 0 : i32
    return %arg0, %c0_i32, %c0_i32_0 : i32, i32, i32
  }
  func.func @transform_1(%arg0: i32, %arg1: i32) -> (i32, i32) {
    %c0_i32 = arith.constant 0 : i32
    %c0_i32_0 = arith.constant 0 : i32
    return %arg1, %c0_i32 : i32, i32
  }
  func.func @transform_2(%arg0: i32, %arg1: i32) -> (i32, i32) {
    %c0_i32 = arith.constant 0 : i32
    %c0_i32_0 = arith.constant 0 : i32
    return %arg1, %c0_i32 : i32, i32
  }
  func.func @transform_3(%arg0: i32, %arg1: i32) -> (i32, i32) {
    %c0_i32 = arith.constant 0 : i32
    %c0_i32_0 = arith.constant 0 : i32
    return %arg1, %c0_i32 : i32, i32
  }
  func.func @transform_4(%arg0: i32, %arg1: i32) -> (i32, i32) {
    %c0_i32 = arith.constant 0 : i32
    %c0_i32_0 = arith.constant 0 : i32
    return %arg1, %c0_i32 : i32, i32
  }
  func.func @transform_5(%arg0: i32, %arg1: i32) -> (i32, i32, i32) {
    %c0_i32 = arith.constant 0 : i32
    %c0_i32_0 = arith.constant 0 : i32
    return %arg0, %arg1, %c0_i32 : i32, i32, i32
  }
}

</mosaic_0001>

<llo_original>
// kernel: tpu_custom_call.1
$region0: #{tpu_custom_call.1}
  #allocation0 [shape = 'u32[]', space=smem, size = 0x4, offset = 0x4, fixed_abs, tag = 'smem constant byte address 0x4 - core index']
  #allocation1 [shape = 'u32[144,128]{1,0:T(1,128)}', space=vmem, size = 0x12000, scoped, tag = 'internal scratch']
  %s0 = inlined_call_operand.vmem [shape: f32[2,16,128], index: 0, kind: input, shape index: {}]
  %s1 = inlined_call_operand.vmem [shape: f32[16,16], index: 1, kind: input, shape index: {}]
  %s2 = inlined_call_operand.vmem [shape: f32[16,1], index: 2, kind: input, shape index: {}]
  %s3 = inlined_call_operand.vmem [shape: f32[16,3], index: 3, kind: input, shape index: {}]
  %s4 = inlined_call_operand.vmem [shape: f32[16,1], index: 4, kind: input, shape index: {}]
  %s5 = inlined_call_operand.hbm [shape: f32[2,16,128], index: 5, kind: output, shape index: {}]
  %s6 = sld [smem:[#allocation0]]
  $region53: #{tpu_custom_call.1} parent=0
    _
  %s8 = ssub.s32 1, %s6
  %s9 = scalar_select 0, %s8, %s6
  $region1: #{tpu_custom_call.1} parent=0
    #allocation2 [shape = 'u8[16384]{0}', space=vmem, size = 0x4000, scoped, tag = 'output window, operand 0']
    #allocation3 [shape = 's32[2]{0}', space=sflag, size = 0x8, scoped, tag = 'scoped memory for tpu_custom_call.1']
    %10 = vsyncpa [#allocation3], 0
    %s11 = scalar_lea.sflag [#allocation3], 1
    %12 = vsyncpa %s11, 0
    loop: start=0, step=1, limit=4
    $region2: #{tpu_custom_call.1} parent=1 // loop_pre_header
      _
    $region3: #{tpu_custom_call.1} parent=1 // loop_header
      %s14 = sphi 0, %s18
      %p15 = scmp.ge.s32.totalorder %s14, 4
      %s21 = sphi 0, %s33
      %s22 = sphi 0, %s29
      %s23 = sphi 0, %s21
      %s24 = sphi 0, %s22
      %s25 = sphi 0, %s23
      %s26 = sphi 0, %s24
      %s36 = sphi 0, %s38
      %s39 = sphi 0, %s36
      %s40 = sphi 0, %s39
      %s56 = sphi 0, %s40
      %s62 = sphi 0, %s64
      %s65 = sphi 0, %s62
      %s66 = sphi 0, %s65
      %s82 = sphi 0, %s66
      %s88 = sphi 0, %s90
      %s91 = sphi 0, %s88
      %s92 = sphi 0, %s91
      %s108 = sphi 0, %s92
      %s114 = sphi 0, %s116
      %s117 = sphi 0, %s114
      %s118 = sphi 0, %s117
      %s134 = sphi 0, %s118
      %s140 = sphi 0, %s142
      %s143 = sphi 0, %s140
      %s144 = sphi 0, %s143
      %s160 = sphi 0, %s144
      %s168 = sphi 0, %s170
      %s171 = sphi 0, %s168
      %s172 = sphi 0, %s171
      %s188 = sphi 0, %s172
    $region4: #{tpu_custom_call.1} parent=1 // loop_header_branch
      %17 = sbr.rel (%p15) target = $region8
    $region5: #{tpu_custom_call.1} parent=1 // loop_body
      %s19 = ssub.s32 %s14, 1
      %s20 = ssub.s32 %s14, 2
      %s27 = sadd.s32 1, %s22
      %p28 = scmp.ge.s32.totalorder %s27, 1
      %s29 = scalar_select %p28, 0, %s27
      %s30 = sadd.s32 1, %s21
      %s31 = scalar_select %p28, %s30, %s21
      %p32 = scmp.ge.s32.totalorder %s31, 2
      %s33 = scalar_select %p32, 0, %s31
      %s34 = ssub.s32 %s21, %s33
      %p35 = scmp.eq.s32.totalorder %s34, 0
      %s37 = sadd.s32 %s36, 1
      %s38 = scalar_select %p35, %s36, %s37
      %p41 = pneg %p35
      %p42 = scmp.eq.s32.totalorder %s14, 1
      %p43 = por %p41, %p42
      %p44 = scmp.ne.s32.totalorder %s36, %s39
      %p45 = scmp.eq.s32.totalorder %s14, 0
      %p46 = por %p44, %p45
      %p47 = scmp.ne.s32.totalorder %s36, %s39
      %p48 = scmp.eq.s32.totalorder %s19, 1
      %p49 = por %p47, %p48
      %p50 = scmp.ne.s32.totalorder %s39, %s40
      %p51 = scmp.eq.s32.totalorder %s19, 0
      %p52 = por %p50, %p51
      %p53 = scmp.ne.s32.totalorder %s39, %s40
      %p54 = scmp.eq.s32.totalorder %s20, 1
      %p55 = por %p53, %p54
      %p57 = scmp.ne.s32.totalorder %s40, %s56
      %p58 = scmp.eq.s32.totalorder %s20, 0
      %p59 = por %p57, %p58
      %s60 = ssub.s32 %s22, %s29
      %p61 = scmp.eq.s32.totalorder %s60, 0
      %s63 = sadd.s32 %s62, 1
      %s64 = scalar_select %p61, %s62, %s63
      %p67 = pneg %p61
      %p68 = scmp.eq.s32.totalorder %s14, 1
      %p69 = por %p67, %p68
      %p70 = scmp.ne.s32.totalorder %s62, %s65
      %p71 = scmp.eq.s32.totalorder %s14, 0
      %p72 = por %p70, %p71
      %p73 = scmp.ne.s32.totalorder %s62, %s65
      %p74 = scmp.eq.s32.totalorder %s19, 1
      %p75 = por %p73, %p74
      %p76 = scmp.ne.s32.totalorder %s65, %s66
      %p77 = scmp.eq.s32.totalorder %s19, 0
      %p78 = por %p76, %p77
      %p79 = scmp.ne.s32.totalorder %s65, %s66
      %p80 = scmp.eq.s32.totalorder %s20, 1
      %p81 = por %p79, %p80
      %p83 = scmp.ne.s32.totalorder %s66, %s82
      %p84 = scmp.eq.s32.totalorder %s20, 0
      %p85 = por %p83, %p84
      %s86 = ssub.s32 %s22, %s29
      %p87 = scmp.eq.s32.totalorder %s86, 0
      %s89 = sadd.s32 %s88, 1
      %s90 = scalar_select %p87, %s88, %s89
      %p93 = pneg %p87
      %p94 = scmp.eq.s32.totalorder %s14, 1
      %p95 = por %p93, %p94
      %p96 = scmp.ne.s32.totalorder %s88, %s91
      %p97 = scmp.eq.s32.totalorder %s14, 0
      %p98 = por %p96, %p97
      %p99 = scmp.ne.s32.totalorder %s88, %s91
      %p100 = scmp.eq.s32.totalorder %s19, 1
      %p101 = por %p99, %p100
      %p102 = scmp.ne.s32.totalorder %s91, %s92
      %p103 = scmp.eq.s32.totalorder %s19, 0
      %p104 = por %p102, %p103
      %p105 = scmp.ne.s32.totalorder %s91, %s92
      %p106 = scmp.eq.s32.totalorder %s20, 1
      %p107 = por %p105, %p106
      %p109 = scmp.ne.s32.totalorder %s92, %s108
      %p110 = scmp.eq.s32.totalorder %s20, 0
      %p111 = por %p109, %p110
      %s112 = ssub.s32 %s22, %s29
      %p113 = scmp.eq.s32.totalorder %s112, 0
      %s115 = sadd.s32 %s114, 1
      %s116 = scalar_select %p113, %s114, %s115
      %p119 = pneg %p113
      %p120 = scmp.eq.s32.totalorder %s14, 1
      %p121 = por %p119, %p120
      %p122 = scmp.ne.s32.totalorder %s114, %s117
      %p123 = scmp.eq.s32.totalorder %s14, 0
      %p124 = por %p122, %p123
      %p125 = scmp.ne.s32.totalorder %s114, %s117
      %p126 = scmp.eq.s32.totalorder %s19, 1
      %p127 = por %p125, %p126
      %p128 = scmp.ne.s32.totalorder %s117, %s118
      %p129 = scmp.eq.s32.totalorder %s19, 0
      %p130 = por %p128, %p129
      %p131 = scmp.ne.s32.totalorder %s117, %s118
      %p132 = scmp.eq.s32.totalorder %s20, 1
      %p133 = por %p131, %p132
      %p135 = scmp.ne.s32.totalorder %s118, %s134
      %p136 = scmp.eq.s32.totalorder %s20, 0
      %p137 = por %p135, %p136
      %s138 = ssub.s32 %s22, %s29
      %p139 = scmp.eq.s32.totalorder %s138, 0
      %s141 = sadd.s32 %s140, 1
      %s142 = scalar_select %p139, %s140, %s141
      %p145 = pneg %p139
      %p146 = scmp.eq.s32.totalorder %s14, 1
      %p147 = por %p145, %p146
      %p148 = scmp.ne.s32.totalorder %s140, %s143
      %p149 = scmp.eq.s32.totalorder %s14, 0
      %p150 = por %p148, %p149
      %p151 = scmp.ne.s32.totalorder %s140, %s143
      %p152 = scmp.eq.s32.totalorder %s19, 1
      %p153 = por %p151, %p152
      %p154 = scmp.ne.s32.totalorder %s143, %s144
      %p155 = scmp.eq.s32.totalorder %s19, 0
      %p156 = por %p154, %p155
      %p157 = scmp.ne.s32.totalorder %s143, %s144
      %p158 = scmp.eq.s32.totalorder %s20, 1
      %p159 = por %p157, %p158
      %p161 = scmp.ne.s32.totalorder %s144, %s160
      %p162 = scmp.eq.s32.totalorder %s20, 0
      %p163 = por %p161, %p162
      %s164 = ssub.s32 %s21, %s33
      %s165 = ssub.s32 %s22, %s29
      %s166 = sor.u32 %s164, %s165
      %p167 = scmp.eq.s32.totalorder %s166, 0
      %s169 = sadd.s32 %s168, 1
      %s170 = scalar_select %p167, %s168, %s169
      %p173 = pneg %p167
      %p174 = scmp.eq.s32.totalorder %s14, 1
      %p175 = por %p173, %p174
      %p176 = scmp.ne.s32.totalorder %s168, %s171
      %p177 = scmp.eq.s32.totalorder %s14, 0
      %p178 = por %p176, %p177
      %p179 = scmp.ne.s32.totalorder %s168, %s171
      %p180 = scmp.eq.s32.totalorder %s19, 1
      %p181 = por %p179, %p180
      %p182 = scmp.ne.s32.totalorder %s171, %s172
      %p183 = scmp.eq.s32.totalorder %s19, 0
      %p184 = por %p182, %p183
      %p185 = scmp.ne.s32.totalorder %s171, %s172
      %p186 = scmp.eq.s32.totalorder %s20, 1
      %p187 = por %p185, %p186
      %p189 = scmp.ne.s32.totalorder %s172, %s188
      %p190 = scmp.eq.s32.totalorder %s20, 0
      %p191 = por %p189, %p190
      %p192 = scmp.le.s32.totalorder 1, %s14
      %p193 = scmp.lt.s32.totalorder %s14, 3
      %p194 = pnand %p192, %p193
      %p195 = pneg %p194
      // Predicated region
      $region9: #{tpu_custom_call.1} parent=5 // pred_check
        _
      $region10: #{tpu_custom_call.1} parent=5 // pred_check_branch
        %197 = sbr.rel (%p194) target = $region12
      $region11: #{tpu_custom_call.1} parent=5 // pred_region
        %s198 = ssub.s32 %s14, 1
        // Predicated region
        $region13: #{tpu_custom_call.1} parent=11 // pred_check
          %p199 = pneg %p78
        $region14: #{tpu_custom_call.1} parent=11 // pred_check_branch
          %201 = sbr.rel (%p199) target = $region16
        $region15: #{tpu_custom_call.1} parent=11 // pred_region
          %s202 = smul.u32 2, %s24
          %p203 = scmp.lt.s32.totalorder %s202, 1
          %s204 = scalar_select %p203, %s202, 1
          %s205 = smul.addr %s204, 8
          %s206 = scalar_lea.vmem %s1, %s205
          %s207 = smul.u32 2, %s24
        $region16: #{tpu_custom_call.1} parent=11 // pred_fallthru
          _
        // Predicated region
        $region17: #{tpu_custom_call.1} parent=11 // pred_check
          %p208 = pneg %p104
        $region18: #{tpu_custom_call.1} parent=11 // pred_check_branch
          %210 = sbr.rel (%p208) target = $region20
        $region19: #{tpu_custom_call.1} parent=11 // pred_region
          %s211 = smul.u32 2, %s24
          %p212 = scmp.lt.s32.totalorder %s211, 1
          %s213 = scalar_select %p212, %s211, 1
          %s214 = smul.addr %s213, 8
          %s215 = scalar_lea.vmem %s2, %s214
          %s216 = smul.u32 2, %s24
        $region20: #{tpu_custom_call.1} parent=11 // pred_fallthru
          _
        // Predicated region
        $region21: #{tpu_custom_call.1} parent=11 // pred_check
          %p217 = pneg %p130
        $region22: #{tpu_custom_call.1} parent=11 // pred_check_branch
          %219 = sbr.rel (%p217) target = $region24
        $region23: #{tpu_custom_call.1} parent=11 // pred_region
          %s220 = smul.u32 2, %s24
          %p221 = scmp.lt.s32.totalorder %s220, 1
          %s222 = scalar_select %p221, %s220, 1
          %s223 = smul.addr %s222, 8
          %s224 = scalar_lea.vmem %s3, %s223
          %s225 = smul.u32 2, %s24
        $region24: #{tpu_custom_call.1} parent=11 // pred_fallthru
          _
        // Predicated region
        $region25: #{tpu_custom_call.1} parent=11 // pred_check
          %p226 = pneg %p156
        $region26: #{tpu_custom_call.1} parent=11 // pred_check_branch
          %228 = sbr.rel (%p226) target = $region28
        $region27: #{tpu_custom_call.1} parent=11 // pred_region
          %s229 = smul.u32 2, %s24
          %p230 = scmp.lt.s32.totalorder %s229, 1
          %s231 = scalar_select %p230, %s229, 1
          %s232 = smul.addr %s231, 8
          %s233 = scalar_lea.vmem %s4, %s232
          %s234 = smul.u32 2, %s24
        $region28: #{tpu_custom_call.1} parent=11 // pred_fallthru
          _
      $region12: #{tpu_custom_call.1} parent=5 // pred_fallthru
        _
      %p235 = scmp.lt.s32.totalorder %s14, 2
      // Predicated region
      $region29: #{tpu_custom_call.1} parent=5 // pred_check
        %p236 = pneg %p235
      $region30: #{tpu_custom_call.1} parent=5 // pred_check_branch
        %238 = sbr.rel (%p236) target = $region32
      $region31: #{tpu_custom_call.1} parent=5 // pred_region
        // Predicated region
        $region33: #{tpu_custom_call.1} parent=31 // pred_check
          %p239 = pneg %p46
        $region34: #{tpu_custom_call.1} parent=31 // pred_check_branch
          %241 = sbr.rel (%p239) target = $region36
        $region35: #{tpu_custom_call.1} parent=31 // pred_region
          %p242 = scmp.lt.s32.totalorder %s21, 1
          %s243 = scalar_select %p242, %s21, 1
          %s244 = smul.addr %s243, 2
          %s245 = smul.addr %s244, 8
          %s246 = scalar_lea.vmem %s0, %s245
        $region36: #{tpu_custom_call.1} parent=31 // pred_fallthru
          _
      $region32: #{tpu_custom_call.1} parent=5 // pred_fallthru
        _
      %p247 = scmp.le.s32.totalorder 1, %s14
      %p248 = scmp.lt.s32.totalorder %s14, 3
      %p249 = pnand %p247, %p248
      %p250 = pneg %p249
      // Predicated region
      $region37: #{tpu_custom_call.1} parent=5 // pred_check
        _
      $region38: #{tpu_custom_call.1} parent=5 // pred_check_branch
        %252 = sbr.rel (%p249) target = $region40
      $region39: #{tpu_custom_call.1} parent=5 // pred_region
        %s253 = ssub.s32 %s14, 1
        %p254 = scmp.lt.s32.totalorder %s23, 1
        %s255 = scalar_select %p254, %s23, 1
        %s256 = smul.addr %s255, 2
        %s257 = smul.addr %s256, 8
        %s258 = scalar_lea.vmem %s0, %s257
        %p259 = pneg %p52
        %p260 = pneg %p49
        %s261 = smul.u32 2, %s24
        %p262 = scmp.lt.s32.totalorder %s261, 1
        %s263 = scalar_select %p262, %s261, 1
        %s264 = smul.addr %s263, 8
        %s265 = scalar_lea.vmem %s1, %s264
        %p266 = pneg %p78
        %p267 = pneg %p75
        %s268 = smul.u32 2, %s24
        %p269 = scmp.lt.s32.totalorder %s268, 1
        %s270 = scalar_select %p269, %s268, 1
        %s271 = smul.addr %s270, 8
        %s272 = scalar_lea.vmem %s2, %s271
        %p273 = pneg %p104
        %p274 = pneg %p101
        %s275 = smul.u32 2, %s24
        %p276 = scmp.lt.s32.totalorder %s275, 1
        %s277 = scalar_select %p276, %s275, 1
        %s278 = smul.addr %s277, 8
        %s279 = scalar_lea.vmem %s3, %s278
        %p280 = pneg %p130
        %p281 = pneg %p127
        %s282 = smul.u32 2, %s24
        %p283 = scmp.lt.s32.totalorder %s282, 1
        %s284 = scalar_select %p283, %s282, 1
        %s285 = smul.addr %s284, 8
        %s286 = scalar_lea.vmem %s4, %s285
        %p287 = pneg %p156
        %p288 = pneg %p153
        %p289 = pneg %p184
        %p290 = pneg %p181
        %s291 = sand.u32 %s171, 1
        %s292 = scalar_lea.sflag [#allocation3], %s291
        %s293 = sand.u32 %s171, 1
        %s294 = smul.addr %s293, 16
        %s295 = scalar_lea.vmem [#allocation2], %s294
        %p296 = scmp.lt.s32.totalorder %s23, 1
        %s297 = scalar_select %p296, %s23, 1
        %s298 = smul.addr %s297, 2
        %s299 = smul.addr %s298, 8
        %s300 = scalar_lea.vmem %s0, %s299
        %s301 = smul.u32 2, %s24
        %p302 = scmp.lt.s32.totalorder %s301, 1
        %s303 = scalar_select %p302, %s301, 1
        %s304 = smul.addr %s303, 8
        %s305 = scalar_lea.vmem %s1, %s304
        %s306 = smul.u32 2, %s24
        %s307 = smul.u32 2, %s24
        %p308 = scmp.lt.s32.totalorder %s307, 1
        %s309 = scalar_select %p308, %s307, 1
        %s310 = smul.addr %s309, 8
        %s311 = scalar_lea.vmem %s2, %s310
        %s312 = smul.u32 2, %s24
        %s313 = smul.u32 2, %s24
        %p314 = scmp.lt.s32.totalorder %s313, 1
        %s315 = scalar_select %p314, %s313, 1
        %s316 = smul.addr %s315, 8
        %s317 = scalar_lea.vmem %s3, %s316
        %s318 = smul.u32 2, %s24
        %s319 = smul.u32 2, %s24
        %p320 = scmp.lt.s32.totalorder %s319, 1
        %s321 = scalar_select %p320, %s319, 1
        %s322 = smul.addr %s321, 8
        %s323 = scalar_lea.vmem %s4, %s322
        %s324 = smul.u32 2, %s24
        %s325 = smul.u32 2, %s24
        %v326 = vld [vmem:[%s300] sm:$0xff]
        %v327 = vld [vmem:[%s300 + $0x8] sm:$0xff]
        %v328 = vld [vmem:[%s305] sm:$0xff]
        %v329 = vld [vmem:[%s305 + $0x8] sm:$0xff]
        %v330 = vld [vmem:[%s311] sm:$0xff]
        %v331 = vld [vmem:[%s311 + $0x8] sm:$0xff]
        %333 = vset.pattern.permute.xlu0 0
        %334 = vperm.xlu0 %333, %v330
        %v335 = vpop.permute.xlu0 %334
        %338 = vset.pattern.permute.xlu0 0
        %339 = vperm.xlu0 %338, %v331
        %v340 = vpop.permute.xlu0 %339
        %vm342 = vcmask 130048
        %v344 = vsel %vm342, %v328, 0
        %v347 = vsel %vm342, %v329, 0
        %349 = vmatprep.subr.mxu0 0.0
        %350 = vmatpush1.msra.mxu0 %v326
        %351 = vmatprep.subr.mxu0 0.0
        %352 = vmatpush1.msra.mxu0 %v327
        %353 = vmatprep.subr.mxu0 0.0
        %354 = vmatpush1.msra.mxu0 0.0
        %355 = vmatprep.subr.mxu0 0.0
        %356 = vmatpush1.msra.mxu0 0.0
        %357 = vmatprep.subr.mxu0 0.0
        %358 = vmatpush1.msra.mxu0 0.0
        %359 = vmatprep.subr.mxu0 0.0
        %360 = vmatpush1.msra.mxu0 0.0
        %361 = vmatprep.subr.mxu0 0.0
        %362 = vmatpush1.msra.mxu0 0.0
        %363 = vmatprep.subr.mxu0 0.0
        %364 = vmatpush1.msra.mxu0 0.0
        %365 = vmatprep.subr.mxu0 0.0
        %366 = vmatpush1.msra.mxu0 0.0
        %367 = vmatprep.subr.mxu0 0.0
        %368 = vmatpush1.msra.mxu0 0.0
        %369 = vmatprep.subr.mxu0 0.0
        %370 = vmatpush1.msra.mxu0 0.0
        %371 = vmatprep.subr.mxu0 0.0
        %372 = vmatpush1.msra.mxu0 0.0
        %373 = vmatprep.subr.mxu0 0.0
        %374 = vmatpush1.msra.mxu0 0.0
        %375 = vmatprep.subr.mxu0 0.0
        %376 = vmatpush1.msra.mxu0 0.0
        %377 = vmatprep.subr.mxu0 0.0
        %378 = vmatpush1.msra.mxu0 0.0
        %379 = vmatprep.subr.mxu0 0.0
        %380 = vmatpush1.msra.mxu0 0.0
        %381 = vmatprep.subr.mxu0 0.0
        %382 = vmatpush1.msra.mxu0 0.0
        %383 = vmatprep.subr.mxu0 0.0
        %384 = vmatpush1.msra.mxu0 0.0
        %385 = vmatprep.subr.mxu0 0.0
        %386 = vmatpush1.msra.mxu0 0.0
        %387 = vmatprep.subr.mxu0 0.0
        %388 = vmatpush1.msra.mxu0 0.0
        %389 = vmatprep.subr.mxu0 0.0
        %390 = vmatpush1.msra.mxu0 0.0
        %391 = vmatprep.subr.mxu0 0.0
        %392 = vmatpush1.msra.mxu0 0.0
        %393 = vmatprep.subr.mxu0 0.0
        %394 = vmatpush1.msra.mxu0 0.0
        %395 = vmatprep.subr.mxu0 0.0
        %396 = vmatpush1.msra.mxu0 0.0
        %397 = vmatprep.subr.mxu0 0.0
        %398 = vmatpush1.msra.mxu0 0.0
        %399 = vmatprep.subr.mxu0 0.0
        %400 = vmatpush1.msra.mxu0 0.0
        %401 = vmatprep.subr.mxu0 0.0
        %402 = vmatpush1.msra.mxu0 0.0
        %403 = vmatprep.subr.mxu0 0.0
        %404 = vmatpush1.msra.mxu0 0.0
        %405 = vmatprep.subr.mxu0 0.0
        %406 = vmatpush1.msra.mxu0 0.0
        %407 = vmatprep.subr.mxu0 0.0
        %408 = vmatpush1.msra.mxu0 0.0
        %409 = vmatprep.subr.mxu0 0.0
        %410 = vmatpush1.msra.mxu0 0.0
        %411 = vmatprep.subr.mxu0 0.0
        %412 = vmatpush1.msra.mxu0 0.0
        %413 = vmatprep.mubr.f32.mxu0 0.0
        %414 = vmatmul.mubr.f32.gmra.mrb[0].mxu0 %v344
        %v415 = vpop.f32.mrb[0].mxu0
        %v416 = vadd.f32 %v335, %v415
        %v417 = vpop.f32.mrb[0].mxu0
        %418 = vmatprep.mubr.f32.mxu0 0.0
        %419 = vmatmul.mubr.f32.gmra.mrb[0].mxu0 %v347
        %v420 = vpop.f32.mrb[0].mxu0
        %v421 = vadd.f32 %v340, %v420
        %v422 = vpop.f32.mrb[0].mxu0
        %423 = vdwg.mxu0
        %v424 = vld [vmem:[%s317] sm:$0xff]
        %v425 = vld [vmem:[%s317 + $0x8] sm:$0xff]
        %428 = vrot.lane.b32.xlu0 %v416, 1
        %v429 = vpop.permute.xlu0 %428
        %430 = vrot.lane.b32.xlu0 %v421, 1
        %v431 = vpop.permute.xlu0 %430
        %vm434 = vcmask 7168
        %v435 = vsel %vm434, 0.0, %v429
        %v436 = vsel %vm434, 0.0, %v431
        %v437 = vsel %vm434, %v429, 0.0
        %v438 = vsel %vm434, %v431, 0.0
        %440 = vset.pattern.permute.xlu0 0
        %441 = vperm.xlu0 %440, %v424
        %v442 = vpop.permute.xlu0 %441
        %445 = vset.pattern.permute.xlu0 0
        %446 = vperm.xlu0 %445, %v425
        %v447 = vpop.permute.xlu0 %446
        %v449 = vmul.f32 %v442, %v435
        %v450 = vmul.f32 %v447, %v436
        %v451 = vadd.f32 %v449, 0.0
        %v452 = vadd.f32 %v450, 0.0
        %453 = vset.pattern.permute.xlu0 1
        %454 = vperm.xlu0 %453, %v424
        %v455 = vpop.permute.xlu0 %454
        %457 = vset.pattern.permute.xlu0 1
        %458 = vperm.xlu0 %457, %v425
        %v459 = vpop.permute.xlu0 %458
        %v461 = vmul.f32 %v455, %v435
        %v462 = vmul.f32 %v455, %v437
        %v463 = vmul.f32 %v459, %v436
        %v464 = vmul.f32 %v459, %v438
        %469 = vrot.lane.b32.xlu0 %v461, 127
        %v470 = vpop.permute.xlu0 %469
        %471 = vrot.lane.b32.xlu0 %v462, 127
        %v472 = vpop.permute.xlu0 %471
        %473 = vrot.lane.b32.xlu0 %v463, 127
        %v474 = vpop.permute.xlu0 %473
        %475 = vrot.lane.b32.xlu0 %v464, 127
        %v476 = vpop.permute.xlu0 %475
        %vm477 = vcmask 1039360
        %v478 = vsel %vm477, %v470, %v472
        %v479 = vsel %vm477, %v474, %v476
        %v482 = vadd.f32 %v451, %v478
        %v483 = vadd.f32 %v452, %v479
        %484 = vset.pattern.permute.xlu0 2
        %485 = vperm.xlu0 %484, %v424
        %v486 = vpop.permute.xlu0 %485
        %488 = vset.pattern.permute.xlu0 2
        %489 = vperm.xlu0 %488, %v425
        %v490 = vpop.permute.xlu0 %489
        %v492 = vmul.f32 %v486, %v435
        %v493 = vmul.f32 %v486, %v437
        %v494 = vmul.f32 %v490, %v436
        %v495 = vmul.f32 %v490, %v438
        %500 = vrot.lane.b32.xlu0 %v492, 126
        %v501 = vpop.permute.xlu0 %500
        %502 = vrot.lane.b32.xlu0 %v493, 126
        %v503 = vpop.permute.xlu0 %502
        %504 = vrot.lane.b32.xlu0 %v494, 126
        %v505 = vpop.permute.xlu0 %504
        %506 = vrot.lane.b32.xlu0 %v495, 126
        %v507 = vpop.permute.xlu0 %506
        %vm508 = vcmask 1031168
        %v509 = vsel %vm508, %v501, %v503
        %v510 = vsel %vm508, %v505, %v507
        %v513 = vadd.f32 %v482, %v509
        %v514 = vadd.f32 %v483, %v510
        %v515 = vld [vmem:[%s323] sm:$0xff]
        %v516 = vld [vmem:[%s323 + $0x8] sm:$0xff]
        %518 = vset.pattern.permute.xlu0 0
        %519 = vperm.xlu0 %518, %v515
        %v520 = vpop.permute.xlu0 %519
        %523 = vset.pattern.permute.xlu0 0
        %524 = vperm.xlu0 %523, %v516
        %v525 = vpop.permute.xlu0 %524
        %v527 = vadd.f32 %v513, %v520
        %v528 = vadd.f32 %v514, %v525
        %529 = vst [vmem:[%s295] sm:$0xff] %v527
        %530 = vst [vmem:[%s295 + $0x8] sm:$0xff] %v528
        %s531 = sand.u32 %s171, 1
        %s532 = scalar_lea.sflag [#allocation3], %s531
        %s533 = sand.u32 %s171, 1
        %s534 = smul.addr %s533, 16
        %s535 = scalar_lea.vmem [#allocation2], %s534
        // Predicated region
        $region41: #{tpu_custom_call.1} parent=39 // pred_check
          %p536 = pneg %p181
        $region42: #{tpu_custom_call.1} parent=39 // pred_check_branch
          %538 = sbr.rel (%p536) target = $region44
        $region43: #{tpu_custom_call.1} parent=39 // pred_region
          %s539 = smul.u32 2, %s24
          %s541 = ssub.s32 256, 256
          %542 = vsyncadd %s532, %s541
          %s543 = smul.addr %s23, 2
          %s544 = sadd.s32 %s539, %s543
          %s545 = smul.addr %s544, 128
          %s546 = scalar_lea.hbm %s5, %s545
          %s547 = sshll.u32 %s535, 4
          %s548 = int_to_ptr.vmem [resolvable:$true] %s547
          %553 = dma.vmem_to_hbm [thread:$0]  %s548, 256, %s546, %s532, 128, 128, 8
        $region44: #{tpu_custom_call.1} parent=39 // pred_fallthru
          _
      $region40: #{tpu_custom_call.1} parent=5 // pred_fallthru
        _
      %p554 = scmp.le.s32.totalorder 2, %s14
      // Predicated region
      $region45: #{tpu_custom_call.1} parent=5 // pred_check
        %p555 = pneg %p554
      $region46: #{tpu_custom_call.1} parent=5 // pred_check_branch
        %557 = sbr.rel (%p555) target = $region48
      $region47: #{tpu_custom_call.1} parent=5 // pred_region
        %s558 = ssub.s32 %s14, 2
        // Predicated region
        $region49: #{tpu_custom_call.1} parent=47 // pred_check
          %p559 = pneg %p187
        $region50: #{tpu_custom_call.1} parent=47 // pred_check_branch
          %561 = sbr.rel (%p559) target = $region52
        $region51: #{tpu_custom_call.1} parent=47 // pred_region
          %s562 = sand.u32 %s172, 1
          %s563 = scalar_lea.sflag [#allocation3], %s562
          %s564 = sand.u32 %s172, 1
          %s565 = smul.addr %s564, 16
          %s566 = scalar_lea.vmem [#allocation2], %s565
          %567 = dma.done %s563, 256
        $region52: #{tpu_custom_call.1} parent=47 // pred_fallthru
          _
      $region48: #{tpu_custom_call.1} parent=5 // pred_fallthru
        _
    $region6: #{tpu_custom_call.1} parent=1 // loop_footer
      %s18 = sadd.s32 1, %s14
    $region7: #{tpu_custom_call.1} parent=1 // loop_footer_branch
      %13 = sbr.rel target = $region3
    $region8: #{tpu_custom_call.1} parent=1 // loop_exit
      _
    %568 = vsyncpa [#allocation3], 1
    %s569 = scalar_lea.sflag [#allocation3], 1
    %570 = vsyncpa %s569, 1

</llo_original>
